<compile_context>
chip_gen: v7x
topology: tpu7x:2x2x1
jax: 0.10.0
libtpu: 0.0.40
codegen_flags: <defaults>
</compile_context>

<pallas_src>
import jax
import jax.numpy as jnp
from jax.experimental import pallas as pl
from jax.experimental.pallas import tpu as pltpu

MAX_TILE_B = 512   # row-tile cap: x tile = 512*TF*2B, out tile = 512*C_pad*4B
LANE = 128


def _round_up(x, m):
    return ((x + m - 1) // m) * m


def _choose_tile_b(batch):
    """Largest batch tile <= MAX_TILE_B, multiple of 8 (sublane granule).

    Keeps the grid at >= 2 steps whenever the batch allows it so
    dimension_semantics=("parallel",) can shard across v7x's two TensorCores;
    tiny batches fall back to a single step.
    """
    if batch <= 16:
        return _round_up(batch, 8)
    return min(MAX_TILE_B, _round_up(pl.cdiv(batch, 2), 8))


def ie_mlp_kernel(x_ref, w1_ref, b1_ref, w2_ref, b2_ref, out_ref):
    # x_ref is bf16; the IE per-feature scaling is already folded into w1_ref.
    h = jnp.dot(x_ref[...], w1_ref[...],
                preferred_element_type=jnp.float32) + b1_ref[...]      # [TB, H]
    h = jnp.maximum(h, 0.0)                                            # ReLU
    out_ref[...] = jnp.dot(h.astype(jnp.bfloat16), w2_ref[...],
                           preferred_element_type=jnp.float32) + b2_ref[...]


def prepare_model_params(w1, b1, w2, b2):
    """One-time weight prep, hoisted out of the per-call jitted path."""
    H = w1.shape[1]
    C = w2.shape[1]
    C_pad = _round_up(C, LANE)                       # lane-dense stores / full MXU N
    w1_f32 = w1.astype(jnp.float32)                  # kept f32: IE fold is per-call
    b1_2d = b1.astype(jnp.float32).reshape(1, H)
    w2_bf = jnp.pad(w2.astype(jnp.float32),
                    ((0, 0), (0, C_pad - C))).astype(jnp.bfloat16)
    b2_2d = jnp.pad(b2.astype(jnp.float32), ((0, C_pad - C),)).reshape(1, C_pad)
    return w1_f32, b1_2d, w2_bf, b2_2d, C


def _ie_mlp_forward(x, ie_weights, w1_f32, b1_2d, w2_bf, b2_2d, n_out):
    """x: [B, T, F]; ie_weights: [F] (trainable); remaining args pre-prepared."""
    B, T, F = x.shape
    TF = T * F
    H = w1_f32.shape[1]
    C_pad = w2_bf.shape[1]

    # ---- per-call layout plumbing (inside the differentiated function) ------
    # Fold the IE diagonal into W1 (exact): (x * iew) @ W1 == x @ (iew[:,None]*W1).
    # jnp.tile ordering matches the row-major (T, F) flatten of x below.
    iew_tf = jnp.tile(ie_weights.astype(jnp.float32), T)               # [TF]
    w1_eff = (iew_tf[:, None] * w1_f32).astype(jnp.bfloat16)           # [TF, H]

    # x as bf16: halves the dominant HBM stream (biggest win on v5e/v6e).
    x_flat = x.reshape(B, TF).astype(jnp.bfloat16)

    tile_b = _choose_tile_b(B)
    B_pad = _round_up(B, tile_b)
    if B_pad != B:
        x_flat = jnp.pad(x_flat, ((0, B_pad - B), (0, 0)))

    grid = (B_pad // tile_b,)

    # Batch-tiled x/out; everything else VMEM-resident via constant index maps.
    x_spec = pl.BlockSpec((tile_b, TF), lambda i: (i, 0))
    out_spec = pl.BlockSpec((tile_b, C_pad), lambda i: (i, 0))
    w1_spec = pl.BlockSpec((TF, H), lambda i: (0, 0))
    b1_spec = pl.BlockSpec((1, H), lambda i: (0, 0))
    w2_spec = pl.BlockSpec((H, C_pad), lambda i: (0, 0))
    b2_spec = pl.BlockSpec((1, C_pad), lambda i: (0, 0))

    bytes_accessed = (x_flat.size * 2 + w1_eff.size * 2 + b1_2d.size * 4
                      + w2_bf.size * 2 + b2_2d.size * 4 + B_pad * C_pad * 4)
    cost = pl.CostEstimate(
        flops=2 * B_pad * TF * H + 2 * B_pad * H * C_pad,
        transcendentals=0,
        bytes_accessed=bytes_accessed)

    out_padded = pl.pallas_call(
        ie_mlp_kernel,
        out_shape=jax.ShapeDtypeStruct((B_pad, C_pad), jnp.float32),
        grid=grid,
        in_specs=[x_spec, w1_spec, b1_spec, w2_spec, b2_spec],
        out_specs=out_spec,
        compiler_params=pltpu.CompilerParams(
            dimension_semantics=("parallel",)),     # shards batch over v7x's 2 TCs
        cost_estimate=cost,
    )(x_flat, w1_eff, b1_2d, w2_bf, b2_2d)

    # Strip batch / channel padding (padded rows carry bias-only garbage).
    return out_padded[:B, :n_out]


def make_ie_forward(w1, b1, w2, b2):
    """Prepare weights once, return a jitted forward(x, ie_weights)."""
    w1_f32, b1_2d, w2_bf, b2_2d, n_out = prepare_model_params(w1, b1, w2, b2)

    @jax.jit
    def forward(x, ie_weights):
        return _ie_mlp_forward(x, ie_weights, w1_f32, b1_2d, w2_bf, b2_2d, n_out)

    return forward


if __name__ == "__main__":
    # Small shapes implied by the module: input_dim = feature dim of the series.
    B, T, F = 200, 8, 32      # ragged batch (not a multiple of 8/128) on purpose
    TF = T * F                # 256
    H = 128                   # hidden width of the synthetic wrapped model
    C = 16                    # output classes of the synthetic wrapped model

    key = jax.random.PRNGKey(0)
    k_x, k_iew, k_w1, k_b1, k_w2, k_b2 = jax.random.split(key, 6)

    x = jax.random.normal(k_x, (B, T, F), dtype=jnp.float32)

    # IE_weights: shape [input_dim]; the module inits to ones — perturb for a
    # non-trivial numerical check.
    ie_weights = 1.0 + 0.1 * jax.random.normal(k_iew, (F,), dtype=jnp.float32)

    # Synthetic wrapped-model parameters (deterministic).
    w1 = jax.random.normal(k_w1, (TF, H), dtype=jnp.float32) * 0.05
    b1 = jax.random.normal(k_b1, (H,), dtype=jnp.float32) * 0.01
    w2 = jax.random.normal(k_w2, (H, C), dtype=jnp.float32) * 0.05
    b2 = jax.random.normal(k_b2, (C,), dtype=jnp.float32) * 0.01

    fwd = make_ie_forward(w1, b1, w2, b2)       # weight prep hoisted, done once
    out = jax.block_until_ready(fwd(x, ie_weights))
    assert out.shape == (B, C)

    # Reference 1: same bf16-operand / f32-accum arithmetic as the kernel
    # (verifies the Pallas data movement / tiling exactly).
    iew_tf = jnp.tile(ie_weights, T)
    w1_eff = (iew_tf[:, None] * w1).astype(jnp.bfloat16)
    x_bf = x.reshape(B, TF).astype(jnp.bfloat16)
    h = jnp.maximum(jnp.dot(x_bf, w1_eff, preferred_element_type=jnp.float32) + b1, 0.0)
    ref_bf = jnp.dot(h.astype(jnp.bfloat16), w2.astype(jnp.bfloat16),
                     preferred_element_type=jnp.float32) + b2
    assert jnp.allclose(out, ref_bf, atol=1e-4, rtol=1e-4), (
        float(jnp.max(jnp.abs(out - ref_bf))))

    # Reference 2: pure-f32 module semantics (new_input = x * IE_weights,
    # then the wrapped MLP). bf16 MXU operands deviate slightly from the
    # torch f32 module — the tolerance documents that deviation.
    scaled = (x * ie_weights[None, None, :]).reshape(B, TF)
    h32 = jnp.maximum(scaled @ w1 + b1, 0.0)
    ref_f32 = h32 @ w2 + b2
    assert jnp.allclose(out, ref_f32, atol=3e-2, rtol=3e-2), (
        float(jnp.max(jnp.abs(out - ref_f32))))

    print("KERNEL_OK")
</pallas_src>

<mosaic_0001>
module attributes {stable_mosaic.version = 11 : i64} {
  func.func @ie_mlp_kernel(%arg0: i32, %arg1: memref<104x256xbf16, #tpu.memory_space<vmem>>, %arg2: memref<256x128xbf16, #tpu.memory_space<vmem>>, %arg3: memref<1x128xf32, #tpu.memory_space<vmem>>, %arg4: memref<128x128xbf16, #tpu.memory_space<vmem>>, %arg5: memref<1x128xf32, #tpu.memory_space<vmem>>, %arg6: memref<104x128xf32, #tpu.memory_space<vmem>>) attributes {dimension_semantics = [#tpu.dimension_semantics<parallel>], iteration_bounds = array<i64: 2>, scalar_prefetch = 0 : i64, scratch_operands = 0 : i64, tpu.core_type = #tpu.core_type<tc>, window_params = [{transform_indices = @transform_0, window_bounds = array<i64: 104, 256>}, {pipeline_mode = #tpu.pipeline_mode<synchronous>, transform_indices = @transform_1, window_bounds = array<i64: 256, 128>}, {pipeline_mode = #tpu.pipeline_mode<synchronous>, transform_indices = @transform_2, window_bounds = array<i64: 1, 128>}, {pipeline_mode = #tpu.pipeline_mode<synchronous>, transform_indices = @transform_3, window_bounds = array<i64: 128, 128>}, {pipeline_mode = #tpu.pipeline_mode<synchronous>, transform_indices = @transform_4, window_bounds = array<i64: 1, 128>}, {transform_indices = @transform_5, window_bounds = array<i64: 104, 128>}]} {
    %c0 = arith.constant 0 : index
    %c0_0 = arith.constant 0 : index
    %0 = vector.load %arg1[%c0, %c0_0] : memref<104x256xbf16, #tpu.memory_space<vmem>>, vector<104x256xbf16>
    %c0_1 = arith.constant 0 : index
    %c0_2 = arith.constant 0 : index
    %1 = vector.load %arg2[%c0_1, %c0_2] : memref<256x128xbf16, #tpu.memory_space<vmem>>, vector<256x128xbf16>
    %cst = arith.constant dense<0.000000e+00> : vector<104x128xf32>
    %2 = tpu.matmul %0, %1, %cst {dimension_numbers = #tpu.dot_dimension_numbers<[1], [0], [0], [1], [0, 0, 1, 1], [], []>} : vector<104x256xbf16>, vector<256x128xbf16>, vector<104x128xf32> -> vector<104x128xf32>
    %c0_3 = arith.constant 0 : index
    %c0_4 = arith.constant 0 : index
    %3 = vector.load %arg3[%c0_3, %c0_4] : memref<1x128xf32, #tpu.memory_space<vmem>>, vector<1x128xf32>
    %4 = vector.broadcast %3 : vector<1x128xf32> to vector<104x128xf32>
    %5 = arith.addf %2, %4 : vector<104x128xf32>
    %cst_5 = arith.constant 0.000000e+00 : f32
    %6 = vector.broadcast %cst_5 : f32 to vector<104x128xf32>
    %7 = arith.maximumf %5, %6 : vector<104x128xf32>
    %8 = arith.truncf %7 : vector<104x128xf32> to vector<104x128xbf16>
    %c0_6 = arith.constant 0 : index
    %c0_7 = arith.constant 0 : index
    %9 = vector.load %arg4[%c0_6, %c0_7] : memref<128x128xbf16, #tpu.memory_space<vmem>>, vector<128x128xbf16>
    %cst_8 = arith.constant dense<0.000000e+00> : vector<104x128xf32>
    %10 = tpu.matmul %8, %9, %cst_8 {dimension_numbers = #tpu.dot_dimension_numbers<[1], [0], [0], [1], [0, 0, 1, 1], [], []>} : vector<104x128xbf16>, vector<128x128xbf16>, vector<104x128xf32> -> vector<104x128xf32>
    %c0_9 = arith.constant 0 : index
    %c0_10 = arith.constant 0 : index
    %11 = vector.load %arg5[%c0_9, %c0_10] : memref<1x128xf32, #tpu.memory_space<vmem>>, vector<1x128xf32>
    %12 = vector.broadcast %11 : vector<1x128xf32> to vector<104x128xf32>
    %13 = arith.addf %10, %12 : vector<104x128xf32>
    %c0_11 = arith.constant 0 : index
    %c0_12 = arith.constant 0 : index
    %14 = vector.load %arg6[%c0_11, %c0_12] : memref<104x128xf32, #tpu.memory_space<vmem>>, vector<104x128xf32>
    tpu.vector_store %arg6[%c0_11, %c0_12], %13 {strides = array<i32>} : memref<104x128xf32, #tpu.memory_space<vmem>>, vector<104x128xf32>,
    return
  }
  func.func @transform_0(%arg0: i32) -> (i32, i32) {
    %c0_i32 = arith.constant 0 : i32
    %c0_i32_0 = arith.constant 0 : i32
    return %arg0, %c0_i32 : i32, i32
  }
  func.func @transform_1(%arg0: i32) -> (i32, i32) {
    %c0_i32 = arith.constant 0 : i32
    %c0_i32_0 = arith.constant 0 : i32
    %c0_i32_1 = arith.constant 0 : i32
    return %c0_i32, %c0_i32_0 : i32, i32
  }
  func.func @transform_2(%arg0: i32) -> (i32, i32) {
    %c0_i32 = arith.constant 0 : i32
    %c0_i32_0 = arith.constant 0 : i32
    %c0_i32_1 = arith.constant 0 : i32
    return %c0_i32, %c0_i32_0 : i32, i32
  }
  func.func @transform_3(%arg0: i32) -> (i32, i32) {
    %c0_i32 = arith.constant 0 : i32
    %c0_i32_0 = arith.constant 0 : i32
    %c0_i32_1 = arith.constant 0 : i32
    return %c0_i32, %c0_i32_0 : i32, i32
  }
  func.func @transform_4(%arg0: i32) -> (i32, i32) {
    %c0_i32 = arith.constant 0 : i32
    %c0_i32_0 = arith.constant 0 : i32
    %c0_i32_1 = arith.constant 0 : i32
    return %c0_i32, %c0_i32_0 : i32, i32
  }
  func.func @transform_5(%arg0: i32) -> (i32, i32) {
    %c0_i32 = arith.constant 0 : i32
    %c0_i32_0 = arith.constant 0 : i32
    return %arg0, %c0_i32 : i32, i32
  }
}

</mosaic_0001>

<llo_original>
// kernel: tile.8
$region0: #{tile.8}
  #allocation0 [shape = 's32[1]{0}', space=sflag, size = 0x4, scoped, tag = 'scoped memory for tile.8']
  %s0 = inlined_call_operand.vmem [shape: f32[32], index: 0, kind: input, shape index: {}]
  %s1 = inlined_call_operand.vmem [shape: f32[8,32], index: 1, kind: output, shape index: {}]
  // Predicated region
  $region2: #{tile.8} parent=0 // pred_check
    _
  $region3: #{tile.8} parent=0 // pred_check_branch
    %3 = sbr.rel (0) target = $region5
  $region4: #{tile.8} parent=0 // pred_region
    _
  $region5: #{tile.8} parent=0 // pred_fallthru
    _
  %v4 = vld [vmem:[%s0] ss:$0 sm:$0xff]
  %5 = vst [vmem:[%s1] sm:$0xff] %v4

// kernel: mul.5
$region0: #{mul.5}
  %s0 = inlined_call_operand.vmem [shape: f32[8,32], index: 0, kind: input, shape index: {}]
  %s1 = inlined_call_operand.vmem [shape: f32[256], index: 1, kind: output, shape index: {}]
  $region1: #{mul.5} parent=0
    #allocation0 [shape = 'u8[4096]{0}', space=vmem, size = 0x1000, scoped, tag = 'scoped mem for output reshape']
    %s2 = smov 3
    %v3 = vld [vmem:[%s0] ss:$4 sm:%s2]
    %vm4 = vcmask 261120
    %5 = vst.msk [vmem:[#allocation0] sm:$0x3] %vm4, %v3
    %s6 = scalar_lea.vmem %s0, 3
    %s7 = smov 3
    %v8 = vld [vmem:[%s6] ss:$4 sm:%s7]
    %9 = vrot.lane.b32.xlu0 %v8, 96
    %v10 = vpop.permute.xlu0 %9
    %vm11 = vcmask 1048320
    %12 = vst.msk [vmem:[#allocation0] sm:$0x3] %vm11, %v10
    %s13 = scalar_lea.vmem %s0, 2
    %s14 = smov 3
    %v15 = vld [vmem:[%s13] ss:$4 sm:%s14]
    %16 = vrot.lane.b32.xlu0 %v15, 64
    %v17 = vpop.permute.xlu0 %16
    %vm18 = vcmask 785920
    %19 = vst.msk [vmem:[#allocation0] sm:$0x3] %vm18, %v17
    %s20 = scalar_lea.vmem %s0, 1
    %s21 = smov 3
    %v22 = vld [vmem:[%s20] ss:$4 sm:%s21]
    %23 = vrot.lane.b32.xlu0 %v22, 32
    %v24 = vpop.permute.xlu0 %23
    %vm25 = vcmask 523520
    %26 = vst.msk [vmem:[#allocation0] sm:$0x3] %vm25, %v24
    %s28 = sshllo.u32 0, 2
    %v30 = vld [vmem:[#allocation0] sm:%s28]
    %s31 = sshllo.u32 0, 2
    %32 = vst [vmem:[%s1] sm:%s31] %v30

// kernel: forward.1
$region0: #{forward.1}
  #allocation0 [shape = 'u32[]', space=smem, size = 0x4, offset = 0x4, fixed_abs, tag = 'smem constant byte address 0x4 - core index']
  #allocation1 [shape = 'u32[144,128]{1,0:T(1,128)}', space=vmem, size = 0x12000, scoped, tag = 'internal scratch']
  %s0 = inlined_call_operand.vmem [shape: bf16[208,256], index: 0, kind: input, shape index: {}]
  %s1 = inlined_call_operand.vmem [shape: bf16[256,128], index: 1, kind: input, shape index: {}]
  %s2 = inlined_call_operand.vmem [shape: f32[1,128], index: 2, kind: input, shape index: {}]
  %s3 = inlined_call_operand.vmem [shape: bf16[128,128], index: 3, kind: input, shape index: {}]
  %s4 = inlined_call_operand.vmem [shape: f32[1,128], index: 4, kind: input, shape index: {}]
  %s5 = inlined_call_operand.vmem [shape: f32[208,128], index: 5, kind: output, shape index: {}]
  %s6 = sld [smem:[#allocation0]]
  $region53: #{forward.1} parent=0
    _
  %s8 = ssub.s32 1, %s6
  %s9 = scalar_select 0, %s8, %s6
  loop: start=0, step=1, limit=4
  $region2: #{forward.1} parent=0 // loop_pre_header
    _
  $region3: #{forward.1} parent=0 // loop_header
    %s11 = sphi 0, %s15
    %p12 = scmp.ge.s32.totalorder %s11, 4
    %s21 = sphi 0, %s23
    %s24 = sphi 0, %s21
    %s25 = sphi 0, %s24
    %s41 = sphi 0, %s25
    %s45 = sphi 0, %s45
    %s47 = sphi 0, %s45
    %s48 = sphi 0, %s47
    %s62 = sphi 0, %s48
    %s66 = sphi 0, %s66
    %s68 = sphi 0, %s66
    %s69 = sphi 0, %s68
    %s83 = sphi 0, %s69
    %s87 = sphi 0, %s87
    %s89 = sphi 0, %s87
    %s90 = sphi 0, %s89
    %s104 = sphi 0, %s90
    %s108 = sphi 0, %s108
    %s110 = sphi 0, %s108
    %s111 = sphi 0, %s110
    %s125 = sphi 0, %s111
    %s131 = sphi 0, %s133
    %s134 = sphi 0, %s131
    %s135 = sphi 0, %s134
    %s151 = sphi 0, %s135
  $region4: #{forward.1} parent=0 // loop_header_branch
    %14 = sbr.rel (%p12) target = $region8
  $region5: #{forward.1} parent=0 // loop_body
    %s16 = ssub.s32 %s11, 1
    %s17 = ssub.s32 %s11, 2
    %s18 = sadd.s32 %s11, 1
    %s19 = ssub.s32 %s11, %s18
    %p20 = scmp.eq.s32.totalorder %s19, 0
    %s22 = sadd.s32 %s21, 1
    %s23 = scalar_select %p20, %s21, %s22
    %p26 = pneg %p20
    %p27 = scmp.eq.s32.totalorder %s11, 1
    %p28 = por %p26, %p27
    %p29 = scmp.ne.s32.totalorder %s21, %s24
    %p30 = scmp.eq.s32.totalorder %s11, 0
    %p31 = por %p29, %p30
    %p32 = scmp.ne.s32.totalorder %s21, %s24
    %p33 = scmp.eq.s32.totalorder %s16, 1
    %p34 = por %p32, %p33
    %p35 = scmp.ne.s32.totalorder %s24, %s25
    %p36 = scmp.eq.s32.totalorder %s16, 0
    %p37 = por %p35, %p36
    %p38 = scmp.ne.s32.totalorder %s24, %s25
    %p39 = scmp.eq.s32.totalorder %s17, 1
    %p40 = por %p38, %p39
    %p42 = scmp.ne.s32.totalorder %s25, %s41
    %p43 = scmp.eq.s32.totalorder %s17, 0
    %p44 = por %p42, %p43
    %s46 = sadd.s32 %s45, 1
    %p49 = scmp.eq.s32.totalorder %s11, 1
    %p50 = scmp.ne.s32.totalorder %s45, %s47
    %p51 = scmp.eq.s32.totalorder %s11, 0
    %p52 = por %p50, %p51
    %p53 = scmp.ne.s32.totalorder %s45, %s47
    %p54 = scmp.eq.s32.totalorder %s16, 1
    %p55 = por %p53, %p54
    %p56 = scmp.ne.s32.totalorder %s47, %s48
    %p57 = scmp.eq.s32.totalorder %s16, 0
    %p58 = por %p56, %p57
    %p59 = scmp.ne.s32.totalorder %s47, %s48
    %p60 = scmp.eq.s32.totalorder %s17, 1
    %p61 = por %p59, %p60
    %p63 = scmp.ne.s32.totalorder %s48, %s62
    %p64 = scmp.eq.s32.totalorder %s17, 0
    %p65 = por %p63, %p64
    %s67 = sadd.s32 %s66, 1
    %p70 = scmp.eq.s32.totalorder %s11, 1
    %p71 = scmp.ne.s32.totalorder %s66, %s68
    %p72 = scmp.eq.s32.totalorder %s11, 0
    %p73 = por %p71, %p72
    %p74 = scmp.ne.s32.totalorder %s66, %s68
    %p75 = scmp.eq.s32.totalorder %s16, 1
    %p76 = por %p74, %p75
    %p77 = scmp.ne.s32.totalorder %s68, %s69
    %p78 = scmp.eq.s32.totalorder %s16, 0
    %p79 = por %p77, %p78
    %p80 = scmp.ne.s32.totalorder %s68, %s69
    %p81 = scmp.eq.s32.totalorder %s17, 1
    %p82 = por %p80, %p81
    %p84 = scmp.ne.s32.totalorder %s69, %s83
    %p85 = scmp.eq.s32.totalorder %s17, 0
    %p86 = por %p84, %p85
    %s88 = sadd.s32 %s87, 1
    %p91 = scmp.eq.s32.totalorder %s11, 1
    %p92 = scmp.ne.s32.totalorder %s87, %s89
    %p93 = scmp.eq.s32.totalorder %s11, 0
    %p94 = por %p92, %p93
    %p95 = scmp.ne.s32.totalorder %s87, %s89
    %p96 = scmp.eq.s32.totalorder %s16, 1
    %p97 = por %p95, %p96
    %p98 = scmp.ne.s32.totalorder %s89, %s90
    %p99 = scmp.eq.s32.totalorder %s16, 0
    %p100 = por %p98, %p99
    %p101 = scmp.ne.s32.totalorder %s89, %s90
    %p102 = scmp.eq.s32.totalorder %s17, 1
    %p103 = por %p101, %p102
    %p105 = scmp.ne.s32.totalorder %s90, %s104
    %p106 = scmp.eq.s32.totalorder %s17, 0
    %p107 = por %p105, %p106
    %s109 = sadd.s32 %s108, 1
    %p112 = scmp.eq.s32.totalorder %s11, 1
    %p113 = scmp.ne.s32.totalorder %s108, %s110
    %p114 = scmp.eq.s32.totalorder %s11, 0
    %p115 = por %p113, %p114
    %p116 = scmp.ne.s32.totalorder %s108, %s110
    %p117 = scmp.eq.s32.totalorder %s16, 1
    %p118 = por %p116, %p117
    %p119 = scmp.ne.s32.totalorder %s110, %s111
    %p120 = scmp.eq.s32.totalorder %s16, 0
    %p121 = por %p119, %p120
    %p122 = scmp.ne.s32.totalorder %s110, %s111
    %p123 = scmp.eq.s32.totalorder %s17, 1
    %p124 = por %p122, %p123
    %p126 = scmp.ne.s32.totalorder %s111, %s125
    %p127 = scmp.eq.s32.totalorder %s17, 0
    %p128 = por %p126, %p127
    %s129 = ssub.s32 %s11, %s18
    %p130 = scmp.eq.s32.totalorder %s129, 0
    %s132 = sadd.s32 %s131, 1
    %s133 = scalar_select %p130, %s131, %s132
    %p136 = pneg %p130
    %p137 = scmp.eq.s32.totalorder %s11, 1
    %p138 = por %p136, %p137
    %p139 = scmp.ne.s32.totalorder %s131, %s134
    %p140 = scmp.eq.s32.totalorder %s11, 0
    %p141 = por %p139, %p140
    %p142 = scmp.ne.s32.totalorder %s131, %s134
    %p143 = scmp.eq.s32.totalorder %s16, 1
    %p144 = por %p142, %p143
    %p145 = scmp.ne.s32.totalorder %s134, %s135
    %p146 = scmp.eq.s32.totalorder %s16, 0
    %p147 = por %p145, %p146
    %p148 = scmp.ne.s32.totalorder %s134, %s135
    %p149 = scmp.eq.s32.totalorder %s17, 1
    %p150 = por %p148, %p149
    %p152 = scmp.ne.s32.totalorder %s135, %s151
    %p153 = scmp.eq.s32.totalorder %s17, 0
    %p154 = por %p152, %p153
    %p155 = scmp.le.s32.totalorder 1, %s11
    %p156 = scmp.lt.s32.totalorder %s11, 3
    %p157 = pnand %p155, %p156
    %p158 = pneg %p157
    // Predicated region
    $region9: #{forward.1} parent=5 // pred_check
      _
    $region10: #{forward.1} parent=5 // pred_check_branch
      %160 = sbr.rel (%p157) target = $region12
    $region11: #{forward.1} parent=5 // pred_region
      %s161 = ssub.s32 %s11, 1
      // Predicated region
      $region13: #{forward.1} parent=11 // pred_check
        %p162 = pneg %p58
      $region14: #{forward.1} parent=11 // pred_check_branch
        %164 = sbr.rel (%p162) target = $region16
      $region15: #{forward.1} parent=11 // pred_region
        _
      $region16: #{forward.1} parent=11 // pred_fallthru
        _
      // Predicated region
      $region17: #{forward.1} parent=11 // pred_check
        %p165 = pneg %p79
      $region18: #{forward.1} parent=11 // pred_check_branch
        %167 = sbr.rel (%p165) target = $region20
      $region19: #{forward.1} parent=11 // pred_region
        _
      $region20: #{forward.1} parent=11 // pred_fallthru
        _
      // Predicated region
      $region21: #{forward.1} parent=11 // pred_check
        %p168 = pneg %p100
      $region22: #{forward.1} parent=11 // pred_check_branch
        %170 = sbr.rel (%p168) target = $region24
      $region23: #{forward.1} parent=11 // pred_region
        _
      $region24: #{forward.1} parent=11 // pred_fallthru
        _
      // Predicated region
      $region25: #{forward.1} parent=11 // pred_check
        %p171 = pneg %p121
      $region26: #{forward.1} parent=11 // pred_check_branch
        %173 = sbr.rel (%p171) target = $region28
      $region27: #{forward.1} parent=11 // pred_region
        _
      $region28: #{forward.1} parent=11 // pred_fallthru
        _
    $region12: #{forward.1} parent=5 // pred_fallthru
      _
    %p174 = scmp.lt.s32.totalorder %s11, 2
    // Predicated region
    $region29: #{forward.1} parent=5 // pred_check
      %p175 = pneg %p174
    $region30: #{forward.1} parent=5 // pred_check_branch
      %177 = sbr.rel (%p175) target = $region32
    $region31: #{forward.1} parent=5 // pred_region
      // Predicated region
      $region33: #{forward.1} parent=31 // pred_check
        %p178 = pneg %p31
      $region34: #{forward.1} parent=31 // pred_check_branch
        %180 = sbr.rel (%p178) target = $region36
      $region35: #{forward.1} parent=31 // pred_region
        %s181 = smul.u32 13, %s11
        %p182 = scmp.lt.s32.totalorder %s181, 25
        %s183 = scalar_select %p182, %s181, 25
        %s184 = smul.addr %s183, 2
        %s185 = smul.addr %s184, 4
        %s186 = scalar_lea.vmem %s0, %s185
        %s187 = smul.u32 13, %s11
      $region36: #{forward.1} parent=31 // pred_fallthru
        _
    $region32: #{forward.1} parent=5 // pred_fallthru
      _
    %p188 = scmp.le.s32.totalorder 1, %s11
    %p189 = scmp.lt.s32.totalorder %s11, 3
    %p190 = pnand %p188, %p189
    %p191 = pneg %p190
    // Predicated region
    $region37: #{forward.1} parent=5 // pred_check
      _
    $region38: #{forward.1} parent=5 // pred_check_branch
      %193 = sbr.rel (%p190) target = $region40
    $region39: #{forward.1} parent=5 // pred_region
      %s194 = ssub.s32 %s11, 1
      %s195 = smul.u32 13, %s16
      %p196 = scmp.lt.s32.totalorder %s195, 25
      %s197 = scalar_select %p196, %s195, 25
      %s198 = smul.addr %s197, 2
      %s199 = smul.addr %s198, 4
      %s200 = scalar_lea.vmem %s0, %s199
      %p201 = pneg %p37
      %p202 = pneg %p34
      %p203 = pneg %p58
      %p204 = pneg %p55
      %p205 = pneg %p79
      %p206 = pneg %p76
      %p207 = pneg %p100
      %p208 = pneg %p97
      %p209 = pneg %p121
      %p210 = pneg %p118
      %p211 = pneg %p147
      %p212 = pneg %p144
      %s213 = smul.u32 13, %s16
      %p214 = scmp.lt.s32.totalorder %s213, 25
      %s215 = scalar_select %p214, %s213, 25
      %s216 = smul.addr %s215, 8
      %s217 = scalar_lea.vmem %s5, %s216
      %s218 = smul.u32 13, %s16
      %p219 = scmp.lt.s32.totalorder %s218, 25
      %s220 = scalar_select %p219, %s218, 25
      %s221 = smul.addr %s220, 2
      %s222 = smul.addr %s221, 4
      %s223 = scalar_lea.vmem %s0, %s222
      %s224 = smul.u32 13, %s16
      %s225 = smul.u32 13, %s16
      %p226 = scmp.lt.s32.totalorder %s225, 25
      %s227 = scalar_select %p226, %s225, 25
      %s228 = smul.addr %s227, 8
      %s229 = scalar_lea.vmem %s5, %s228
      %s230 = smul.u32 13, %s16
      %v232 = vld [vmem:[%s223] sm:$0xff]
      %v233 = vld [vmem:[%s223 + $0x8] sm:$0xff]
      %v234 = vld [vmem:[%s223 + $0x10] sm:$0xff]
      %v235 = vld [vmem:[%s223 + $0x18] sm:$0xff]
      %v236 = vld [vmem:[%s223 + $0x20] sm:$0xff]
      %v237 = vld [vmem:[%s223 + $0x28] sm:$0xff]
      %v238 = vld [vmem:[%s223 + $0x30] sm:$0xff]
      %v239 = vld [vmem:[%s223 + $0x38] sm:$0xff]
      %v240 = vld [vmem:[%s223 + $0x40] sm:$0xff]
      %v241 = vld [vmem:[%s223 + $0x48] sm:$0xff]
      %v242 = vld [vmem:[%s223 + $0x50] sm:$0xff]
      %v243 = vld [vmem:[%s223 + $0x58] sm:$0xff]
      %v244 = vld [vmem:[%s223 + $0x60] sm:$0xff]
      %v245 = vld [vmem:[%s1] sm:$0xf]
      %v246 = vld [vmem:[%s1 + $0x4] sm:$0xf]
      %v247 = vld [vmem:[%s1 + $0x8] sm:$0xf]
      %v248 = vld [vmem:[%s1 + $0xc] sm:$0xf]
      %v249 = vld [vmem:[%s1 + $0x10] sm:$0xf]
      %v250 = vld [vmem:[%s1 + $0x14] sm:$0xf]
      %v251 = vld [vmem:[%s1 + $0x18] sm:$0xf]
      %v252 = vld [vmem:[%s1 + $0x1c] sm:$0xf]
      %v253 = vld [vmem:[%s1 + $0x20] sm:$0xf]
      %v254 = vld [vmem:[%s1 + $0x24] sm:$0xf]
      %v255 = vld [vmem:[%s1 + $0x28] sm:$0xf]
      %v256 = vld [vmem:[%s1 + $0x2c] sm:$0xf]
      %v257 = vld [vmem:[%s1 + $0x30] sm:$0xf]
      %v258 = vld [vmem:[%s1 + $0x34] sm:$0xf]
      %v259 = vld [vmem:[%s1 + $0x38] sm:$0xf]
      %v260 = vld [vmem:[%s1 + $0x3c] sm:$0xf]
      %v261 = vld [vmem:[%s1 + $0x40] sm:$0xf]
      %v262 = vld [vmem:[%s1 + $0x44] sm:$0xf]
      %v263 = vld [vmem:[%s1 + $0x48] sm:$0xf]
      %v264 = vld [vmem:[%s1 + $0x4c] sm:$0xf]
      %v265 = vld [vmem:[%s1 + $0x50] sm:$0xf]
      %v266 = vld [vmem:[%s1 + $0x54] sm:$0xf]
      %v267 = vld [vmem:[%s1 + $0x58] sm:$0xf]
      %v268 = vld [vmem:[%s1 + $0x5c] sm:$0xf]
      %v269 = vld [vmem:[%s1 + $0x60] sm:$0xf]
      %v270 = vld [vmem:[%s1 + $0x64] sm:$0xf]
      %v271 = vld [vmem:[%s1 + $0x68] sm:$0xf]
      %v272 = vld [vmem:[%s1 + $0x6c] sm:$0xf]
      %v273 = vld [vmem:[%s1 + $0x70] sm:$0xf]
      %v274 = vld [vmem:[%s1 + $0x74] sm:$0xf]
      %v275 = vld [vmem:[%s1 + $0x78] sm:$0xf]
      %v276 = vld [vmem:[%s1 + $0x7c] sm:$0xf]
      %v277 = vld [vmem:[%s2] sm:$0x1]
      %v279 = vlaneseq
      %v280 = vshrl.u32 %v279, 7
      %v281 = vsub.s32 0, %v280
      %v282 = vrot.slane %v277, %v281
      %v297 = vunpack.c.l.b16 %v232
      %v298 = vunpack.c.h.b16 %v232
      %v299 = vunpack.c.l.b16 %v233
      %v300 = vunpack.c.h.b16 %v233
      %v301 = vunpack.c.l.b16 %v234
      %v302 = vunpack.c.h.b16 %v234
      %v303 = vunpack.c.l.b16 %v235
      %v304 = vunpack.c.h.b16 %v235
      %v305 = vunpack.c.l.b16 %v236
      %v306 = vunpack.c.h.b16 %v236
      %v307 = vunpack.c.l.b16 %v237
      %v308 = vunpack.c.h.b16 %v237
      %v309 = vunpack.c.l.b16 %v238
      %v310 = vunpack.c.h.b16 %v238
      %v311 = vunpack.c.l.b16 %v239
      %v312 = vunpack.c.h.b16 %v239
      %v313 = vunpack.c.l.b16 %v240
      %v314 = vunpack.c.h.b16 %v240
      %v315 = vunpack.c.l.b16 %v241
      %v316 = vunpack.c.h.b16 %v241
      %v317 = vunpack.c.l.b16 %v242
      %v318 = vunpack.c.h.b16 %v242
      %v319 = vunpack.c.l.b16 %v243
      %v320 = vunpack.c.h.b16 %v243
      %v321 = vunpack.c.l.b16 %v244
      %v322 = vunpack.c.h.b16 %v244
      %v323 = vpack.c.b16 %v299, %v297
      %v324 = vpack.c.b16 %v300, %v298
      %v325 = vpack.c.b16 %v303, %v301
      %v326 = vpack.c.b16 %v304, %v302
      %v327 = vpack.c.b16 %v307, %v305
      %v328 = vpack.c.b16 %v308, %v306
      %v329 = vpack.c.b16 %v311, %v309
      %v330 = vpack.c.b16 %v312, %v310
      %v331 = vpack.c.b16 %v315, %v313
      %v332 = vpack.c.b16 %v316, %v314
      %v333 = vpack.c.b16 %v319, %v317
      %v334 = vpack.c.b16 %v320, %v318
      %v335 = vpack.c.b16 %v321, %v321
      %v336 = vpack.c.b16 %v322, %v322
      %v383 = vunpack.c.l.b16 %v245
      %v384 = vunpack.c.l.b16 %v246
      %v385 = vunpack.c.l.b16 %v247
      %v386 = vunpack.c.l.b16 %v248
      %v387 = vunpack.c.l.b16 %v249
      %v388 = vunpack.c.l.b16 %v250
      %v389 = vunpack.c.l.b16 %v251
      %v390 = vunpack.c.l.b16 %v252
      %v391 = vunpack.c.l.b16 %v253
      %v392 = vunpack.c.l.b16 %v254
      %v393 = vunpack.c.l.b16 %v255
      %v394 = vunpack.c.l.b16 %v256
      %v395 = vunpack.c.l.b16 %v257
      %v396 = vunpack.c.l.b16 %v258
      %v397 = vunpack.c.l.b16 %v259
      %v398 = vunpack.c.l.b16 %v260
      %v399 = vunpack.c.l.b16 %v261
      %v400 = vunpack.c.l.b16 %v262
      %v401 = vunpack.c.l.b16 %v263
      %v402 = vunpack.c.l.b16 %v264
      %v403 = vunpack.c.l.b16 %v265
      %v404 = vunpack.c.l.b16 %v266
      %v405 = vunpack.c.l.b16 %v267
      %v406 = vunpack.c.l.b16 %v268
      %v407 = vunpack.c.l.b16 %v269
      %v408 = vunpack.c.l.b16 %v270
      %v409 = vunpack.c.l.b16 %v271
      %v410 = vunpack.c.l.b16 %v272
      %v411 = vunpack.c.l.b16 %v273
      %v412 = vunpack.c.l.b16 %v274
      %v413 = vunpack.c.l.b16 %v275
      %v414 = vunpack.c.l.b16 %v276
      %v415 = vpack.c.b16 %v384, %v383
      %v416 = vpack.c.b16 %v386, %v385
      %v417 = vpack.c.b16 %v388, %v387
      %v418 = vpack.c.b16 %v390, %v389
      %v419 = vpack.c.b16 %v392, %v391
      %v420 = vpack.c.b16 %v394, %v393
      %v421 = vpack.c.b16 %v396, %v395
      %v422 = vpack.c.b16 %v398, %v397
      %v423 = vpack.c.b16 %v400, %v399
      %v424 = vpack.c.b16 %v402, %v401
      %v425 = vpack.c.b16 %v404, %v403
      %v426 = vpack.c.b16 %v406, %v405
      %v427 = vpack.c.b16 %v408, %v407
      %v428 = vpack.c.b16 %v410, %v409
      %v429 = vpack.c.b16 %v412, %v411
      %v430 = vpack.c.b16 %v414, %v413
      %447 = vmatprep.subr.bf16.mxu0 0
      %448 = vmatpush1.bf16.msra.mxu0 %v415
      %449 = vmatprep.subr.bf16.mxu0 0
      %450 = vmatpush1.bf16.msra.mxu0 %v416
      %451 = vmatprep.subr.bf16.mxu0 0
      %452 = vmatpush1.bf16.msra.mxu0 %v417
      %453 = vmatprep.subr.bf16.mxu0 0
      %454 = vmatpush1.bf16.msra.mxu0 %v418
      %455 = vmatprep.subr.bf16.mxu0 0
      %456 = vmatpush1.bf16.msra.mxu0 %v419
      %457 = vmatprep.subr.bf16.mxu0 0
      %458 = vmatpush1.bf16.msra.mxu0 %v420
      %459 = vmatprep.subr.bf16.mxu0 0
      %460 = vmatpush1.bf16.msra.mxu0 %v421
      %461 = vmatprep.subr.bf16.mxu0 0
      %462 = vmatpush1.bf16.msra.mxu0 %v422
      %463 = vmatprep.subr.bf16.mxu0 0
      %464 = vmatpush1.bf16.msra.mxu0 %v423
      %465 = vmatprep.subr.bf16.mxu0 0
      %466 = vmatpush1.bf16.msra.mxu0 %v424
      %467 = vmatprep.subr.bf16.mxu0 0
      %468 = vmatpush1.bf16.msra.mxu0 %v425
      %469 = vmatprep.subr.bf16.mxu0 0
      %470 = vmatpush1.bf16.msra.mxu0 %v426
      %471 = vmatprep.subr.bf16.mxu0 0
      %472 = vmatpush1.bf16.msra.mxu0 %v427
      %473 = vmatprep.subr.bf16.mxu0 0
      %474 = vmatpush1.bf16.msra.mxu0 %v428
      %475 = vmatprep.subr.bf16.mxu0 0
      %476 = vmatpush1.bf16.msra.mxu0 %v429
      %477 = vmatprep.subr.bf16.mxu0 0
      %478 = vmatpush1.bf16.msra.mxu0 %v430
      %479 = vmatprep.mubr.bf16.mxu0 %v324
      %480 = vmatmul.mubr.bf16.gmra.mrb[0].mxu0 %v323
      %v481 = vpop.f32.mrb[0].mxu0
      %v482 = vadd.f32 %v282, %v481
      %v483 = vpop.f32.mrb[0].mxu0
      %v484 = vpop.f32.mrb[0].mxu0
      %v485 = vadd.f32 %v282, %v484
      %v486 = vpop.f32.mrb[0].mxu0
      %487 = vmatprep.mubr.bf16.mxu0 %v326
      %488 = vmatmul.mubr.bf16.gmra.mrb[0].mxu0 %v325
      %v489 = vpop.f32.mrb[0].mxu0
      %v490 = vadd.f32 %v282, %v489
      %v491 = vpop.f32.mrb[0].mxu0
      %v492 = vpop.f32.mrb[0].mxu0
      %v493 = vadd.f32 %v282, %v492
      %v494 = vpop.f32.mrb[0].mxu0
      %495 = vmatprep.mubr.bf16.mxu0 %v328
      %496 = vmatmul.mubr.bf16.gmra.mrb[0].mxu0 %v327
      %v497 = vpop.f32.mrb[0].mxu0
      %v498 = vadd.f32 %v282, %v497
      %v499 = vpop.f32.mrb[0].mxu0
      %v500 = vpop.f32.mrb[0].mxu0
      %v501 = vadd.f32 %v282, %v500
      %v502 = vpop.f32.mrb[0].mxu0
      %503 = vmatprep.mubr.bf16.mxu0 %v330
      %504 = vmatmul.mubr.bf16.gmra.mrb[0].mxu0 %v329
      %v505 = vpop.f32.mrb[0].mxu0
      %v506 = vadd.f32 %v282, %v505
      %v507 = vpop.f32.mrb[0].mxu0
      %v508 = vpop.f32.mrb[0].mxu0
      %v509 = vadd.f32 %v282, %v508
      %v510 = vpop.f32.mrb[0].mxu0
      %511 = vmatprep.mubr.bf16.mxu0 %v332
      %512 = vmatmul.mubr.bf16.gmra.mrb[0].mxu0 %v331
      %v513 = vpop.f32.mrb[0].mxu0
      %v514 = vadd.f32 %v282, %v513
      %v515 = vpop.f32.mrb[0].mxu0
      %v516 = vpop.f32.mrb[0].mxu0
      %v517 = vadd.f32 %v282, %v516
      %v518 = vpop.f32.mrb[0].mxu0
      %519 = vmatprep.mubr.bf16.mxu0 %v334
      %520 = vmatmul.mubr.bf16.gmra.mrb[0].mxu0 %v333
      %v521 = vpop.f32.mrb[0].mxu0
      %v522 = vadd.f32 %v282, %v521
      %v523 = vpop.f32.mrb[0].mxu0
      %v524 = vpop.f32.mrb[0].mxu0
      %v525 = vadd.f32 %v282, %v524
      %v526 = vpop.f32.mrb[0].mxu0
      %527 = vmatprep.mubr.bf16.mxu0 %v336
      %528 = vmatmul.mubr.bf16.gmra.mrb[0].mxu0 %v335
      %v529 = vpop.f32.mrb[0].mxu0
      %v530 = vadd.f32 %v282, %v529
      %v531 = vpop.f32.mrb[0].mxu0
      %v532 = vpop.f32.mrb[0].mxu0
      %v533 = vpop.f32.mrb[0].mxu0
      %534 = vdwg.mxu0
      %v535 = vmax.f32 %v482, 0.0
      %v536 = vmax.f32 %v485, 0.0
      %v537 = vmax.f32 %v490, 0.0
      %v538 = vmax.f32 %v493, 0.0
      %v539 = vmax.f32 %v498, 0.0
      %v540 = vmax.f32 %v501, 0.0
      %v541 = vmax.f32 %v506, 0.0
      %v542 = vmax.f32 %v509, 0.0
      %v543 = vmax.f32 %v514, 0.0
      %v544 = vmax.f32 %v517, 0.0
      %v545 = vmax.f32 %v522, 0.0
      %v546 = vmax.f32 %v525, 0.0
      %v547 = vmax.f32 %v530, 0.0
      %v548 = vpack.c.bf16 %v536, %v535
      %v549 = vpack.c.bf16 %v538, %v537
      %v550 = vpack.c.bf16 %v540, %v539
      %v551 = vpack.c.bf16 %v542, %v541
      %v552 = vpack.c.bf16 %v544, %v543
      %v553 = vpack.c.bf16 %v546, %v545
      %v554 = vpack.c.bf16 %v547, %v547
      %v555 = vld [vmem:[%s3] sm:$0xf]
      %v556 = vld [vmem:[%s3 + $0x4] sm:$0xf]
      %v557 = vld [vmem:[%s3 + $0x8] sm:$0xf]
      %v558 = vld [vmem:[%s3 + $0xc] sm:$0xf]
      %v559 = vld [vmem:[%s3 + $0x10] sm:$0xf]
      %v560 = vld [vmem:[%s3 + $0x14] sm:$0xf]
      %v561 = vld [vmem:[%s3 + $0x18] sm:$0xf]
      %v562 = vld [vmem:[%s3 + $0x1c] sm:$0xf]
      %v563 = vld [vmem:[%s3 + $0x20] sm:$0xf]
      %v564 = vld [vmem:[%s3 + $0x24] sm:$0xf]
      %v565 = vld [vmem:[%s3 + $0x28] sm:$0xf]
      %v566 = vld [vmem:[%s3 + $0x2c] sm:$0xf]
      %v567 = vld [vmem:[%s3 + $0x30] sm:$0xf]
      %v568 = vld [vmem:[%s3 + $0x34] sm:$0xf]
      %v569 = vld [vmem:[%s3 + $0x38] sm:$0xf]
      %v570 = vld [vmem:[%s3 + $0x3c] sm:$0xf]
      %v571 = vld [vmem:[%s4] sm:$0x1]
      %v573 = vlaneseq
      %v574 = vshrl.u32 %v573, 7
      %v575 = vsub.s32 0, %v574
      %v576 = vrot.slane %v571, %v575
      %v594 = vunpack.c.l.b16 %v555
      %v595 = vunpack.c.l.b16 %v556
      %v596 = vunpack.c.l.b16 %v557
      %v597 = vunpack.c.l.b16 %v558
      %v598 = vunpack.c.l.b16 %v559
      %v599 = vunpack.c.l.b16 %v560
      %v600 = vunpack.c.l.b16 %v561
      %v601 = vunpack.c.l.b16 %v562
      %v602 = vunpack.c.l.b16 %v563
      %v603 = vunpack.c.l.b16 %v564
      %v604 = vunpack.c.l.b16 %v565
      %v605 = vunpack.c.l.b16 %v566
      %v606 = vunpack.c.l.b16 %v567
      %v607 = vunpack.c.l.b16 %v568
      %v608 = vunpack.c.l.b16 %v569
      %v609 = vunpack.c.l.b16 %v570
      %v610 = vpack.c.b16 %v595, %v594
      %v611 = vpack.c.b16 %v597, %v596
      %v612 = vpack.c.b16 %v599, %v598
      %v613 = vpack.c.b16 %v601, %v600
      %v614 = vpack.c.b16 %v603, %v602
      %v615 = vpack.c.b16 %v605, %v604
      %v616 = vpack.c.b16 %v607, %v606
      %v617 = vpack.c.b16 %v609, %v608
      %626 = vmatprep.subr.bf16.mxu0 0
      %627 = vmatpush1.bf16.msra.mxu0 %v610
      %628 = vmatprep.subr.bf16.mxu0 0
      %629 = vmatpush1.bf16.msra.mxu0 %v611
      %630 = vmatprep.subr.bf16.mxu0 0
      %631 = vmatpush1.bf16.msra.mxu0 %v612
      %632 = vmatprep.subr.bf16.mxu0 0
      %633 = vmatpush1.bf16.msra.mxu0 %v613
      %634 = vmatprep.subr.bf16.mxu0 0
      %635 = vmatpush1.bf16.msra.mxu0 %v614
      %636 = vmatprep.subr.bf16.mxu0 0
      %637 = vmatpush1.bf16.msra.mxu0 %v615
      %638 = vmatprep.subr.bf16.mxu0 0
      %639 = vmatpush1.bf16.msra.mxu0 %v616
      %640 = vmatprep.subr.bf16.mxu0 0
      %641 = vmatpush1.bf16.msra.mxu0 %v617
      %642 = vmatprep.subr.bf16.mxu0 0
      %643 = vmatpush1.bf16.msra.mxu0 0
      %644 = vmatprep.subr.bf16.mxu0 0
      %645 = vmatpush1.bf16.msra.mxu0 0
      %646 = vmatprep.subr.bf16.mxu0 0
      %647 = vmatpush1.bf16.msra.mxu0 0
      %648 = vmatprep.subr.bf16.mxu0 0
      %649 = vmatpush1.bf16.msra.mxu0 0
      %650 = vmatprep.subr.bf16.mxu0 0
      %651 = vmatpush1.bf16.msra.mxu0 0
      %652 = vmatprep.subr.bf16.mxu0 0
      %653 = vmatpush1.bf16.msra.mxu0 0
      %654 = vmatprep.subr.bf16.mxu0 0
      %655 = vmatpush1.bf16.msra.mxu0 0
      %656 = vmatprep.subr.bf16.mxu0 0
      %657 = vmatpush1.bf16.msra.mxu0 0
      %658 = vmatprep.mubr.bf16.mxu0 0
      %659 = vmatmul.mubr.bf16.gmra.mrb[0].mxu0 %v548
      %v660 = vpop.f32.mrb[0].mxu0
      %v661 = vadd.f32 %v576, %v660
      %v662 = vpop.f32.mrb[0].mxu0
      %v663 = vpop.f32.mrb[0].mxu0
      %v664 = vadd.f32 %v576, %v663
      %v665 = vpop.f32.mrb[0].mxu0
      %666 = vmatprep.mubr.bf16.mxu0 0
      %667 = vmatmul.mubr.bf16.gmra.mrb[0].mxu0 %v549
      %v668 = vpop.f32.mrb[0].mxu0
      %v669 = vadd.f32 %v576, %v668
      %v670 = vpop.f32.mrb[0].mxu0
      %v671 = vpop.f32.mrb[0].mxu0
      %v672 = vadd.f32 %v576, %v671
      %v673 = vpop.f32.mrb[0].mxu0
      %674 = vmatprep.mubr.bf16.mxu0 0
      %675 = vmatmul.mubr.bf16.gmra.mrb[0].mxu0 %v550
      %v676 = vpop.f32.mrb[0].mxu0
      %v677 = vadd.f32 %v576, %v676
      %v678 = vpop.f32.mrb[0].mxu0
      %v679 = vpop.f32.mrb[0].mxu0
      %v680 = vadd.f32 %v576, %v679
      %v681 = vpop.f32.mrb[0].mxu0
      %682 = vmatprep.mubr.bf16.mxu0 0
      %683 = vmatmul.mubr.bf16.gmra.mrb[0].mxu0 %v551
      %v684 = vpop.f32.mrb[0].mxu0
      %v685 = vadd.f32 %v576, %v684
      %v686 = vpop.f32.mrb[0].mxu0
      %v687 = vpop.f32.mrb[0].mxu0
      %v688 = vadd.f32 %v576, %v687
      %v689 = vpop.f32.mrb[0].mxu0
      %690 = vmatprep.mubr.bf16.mxu0 0
      %691 = vmatmul.mubr.bf16.gmra.mrb[0].mxu0 %v552
      %v692 = vpop.f32.mrb[0].mxu0
      %v693 = vadd.f32 %v576, %v692
      %v694 = vpop.f32.mrb[0].mxu0
      %v695 = vpop.f32.mrb[0].mxu0
      %v696 = vadd.f32 %v576, %v695
      %v697 = vpop.f32.mrb[0].mxu0
      %698 = vmatprep.mubr.bf16.mxu0 0
      %699 = vmatmul.mubr.bf16.gmra.mrb[0].mxu0 %v553
      %v700 = vpop.f32.mrb[0].mxu0
      %v701 = vadd.f32 %v576, %v700
      %v702 = vpop.f32.mrb[0].mxu0
      %v703 = vpop.f32.mrb[0].mxu0
      %v704 = vadd.f32 %v576, %v703
      %v705 = vpop.f32.mrb[0].mxu0
      %706 = vmatprep.mubr.bf16.mxu0 0
      %707 = vmatmul.mubr.bf16.gmra.mrb[0].mxu0 %v554
      %v708 = vpop.f32.mrb[0].mxu0
      %v709 = vadd.f32 %v576, %v708
      %v710 = vpop.f32.mrb[0].mxu0
      %v711 = vpop.f32.mrb[0].mxu0
      %v712 = vpop.f32.mrb[0].mxu0
      %713 = vdwg.mxu0
      %714 = vst [vmem:[%s229] sm:$0xff] %v661
      %715 = vst [vmem:[%s229 + $0x8] sm:$0xff] %v664
      %716 = vst [vmem:[%s229 + $0x10] sm:$0xff] %v669
      %717 = vst [vmem:[%s229 + $0x18] sm:$0xff] %v672
      %718 = vst [vmem:[%s229 + $0x20] sm:$0xff] %v677
      %719 = vst [vmem:[%s229 + $0x28] sm:$0xff] %v680
      %720 = vst [vmem:[%s229 + $0x30] sm:$0xff] %v685
      %721 = vst [vmem:[%s229 + $0x38] sm:$0xff] %v688
      %722 = vst [vmem:[%s229 + $0x40] sm:$0xff] %v693
      %723 = vst [vmem:[%s229 + $0x48] sm:$0xff] %v696
      %724 = vst [vmem:[%s229 + $0x50] sm:$0xff] %v701
      %725 = vst [vmem:[%s229 + $0x58] sm:$0xff] %v704
      %726 = vst [vmem:[%s229 + $0x60] sm:$0xff] %v709
      %s727 = smul.u32 13, %s16
      %p728 = scmp.lt.s32.totalorder %s727, 25
      %s729 = scalar_select %p728, %s727, 25
      %s730 = smul.addr %s729, 8
      %s731 = scalar_lea.vmem %s5, %s730
      // Predicated region
      $region41: #{forward.1} parent=39 // pred_check
        %p732 = pneg %p144
      $region42: #{forward.1} parent=39 // pred_check_branch
        %734 = sbr.rel (%p732) target = $region44
      $region43: #{forward.1} parent=39 // pred_region
        %s735 = smul.u32 13, %s16
      $region44: #{forward.1} parent=39 // pred_fallthru
        _
    $region40: #{forward.1} parent=5 // pred_fallthru
      _
    %p736 = scmp.le.s32.totalorder 2, %s11
    // Predicated region
    $region45: #{forward.1} parent=5 // pred_check
      %p737 = pneg %p736
    $region46: #{forward.1} parent=5 // pred_check_branch
      %739 = sbr.rel (%p737) target = $region48
    $region47: #{forward.1} parent=5 // pred_region
      %s740 = ssub.s32 %s11, 2
      // Predicated region
      $region49: #{forward.1} parent=47 // pred_check
        %p741 = pneg %p150
      $region50: #{forward.1} parent=47 // pred_check_branch
        %743 = sbr.rel (%p741) target = $region52
      $region51: #{forward.1} parent=47 // pred_region
        %s744 = smul.u32 13, %s17
        %p745 = scmp.lt.s32.totalorder %s744, 25
        %s746 = scalar_select %p745, %s744, 25
        %s747 = smul.addr %s746, 8
        %s748 = scalar_lea.vmem %s5, %s747
      $region52: #{forward.1} parent=47 // pred_fallthru
        _
    $region48: #{forward.1} parent=5 // pred_fallthru
      _
  $region6: #{forward.1} parent=0 // loop_footer
    %s15 = sadd.s32 1, %s11
  $region7: #{forward.1} parent=0 // loop_footer_branch
    %10 = sbr.rel target = $region3
  $region8: #{forward.1} parent=0 // loop_exit
    _

</llo_original>
